<compile_context>
chip_gen: v5e
topology: v5e:2x2
jax: 0.10.0
libtpu: 0.0.40
codegen_flags: <defaults>
</compile_context>

<pallas_src>
import functools

import jax
import jax.numpy as jnp
import numpy as np
from jax import lax
from jax.experimental import pallas as pl
from jax.experimental.pallas import tpu as pltpu

CIN = 3        # input channels
CMID = 3       # Embedding Conv2d out channels
COUT = 3       # ConvTranspose2d out channels
K = 3          # kernel size (both convs)
STRIDE = 3     # stride (both convs)
K1 = CIN * K * K     # 27: conv contraction size
K2 = COUT * K * K    # 27: transpose-conv tap count


def _fused_kernel(a_ref, w1_ref, b1_ref, w2_ref, b2_ref, o_ref):
    # a_ref : (27, TM)  patches; rows = (ci, kh, kw), cols = flattened (n, i, j)
    # w1_ref: (3, 27)   b1_ref: (3, 1)    (always f32; tiny)
    # w2_ref: (27, 3)   b2_ref: (27, 1)
    # o_ref : (27, TM)  rows = (co, kh, kw)
    a = a_ref[...].astype(jnp.float32)                       # no-op for f32 I/O; unpack for bf16 I/O
    # conv: contraction dim 27 (left operand tiny; kernel is HBM-bound, MXU occupancy irrelevant)
    y = jnp.dot(w1_ref[...], a, preferred_element_type=jnp.float32) + b1_ref[...]   # (3, TM)
    y = jnp.maximum(y, 0.0)                                                          # ReLU
    # transpose-conv: contraction dim 3
    z = jnp.dot(w2_ref[...], y, preferred_element_type=jnp.float32) + b2_ref[...]    # (27, TM)
    o_ref[...] = z.astype(o_ref.dtype)


def embedding_mod_forward(x, w1, b1, w2, b2, *, io_dtype=jnp.float32):
    """x: (N, CIN, H, W) float32 NCHW.  Returns (N, CIN, H, W) like the PyTorch module.

    io_dtype controls the dtype of the two big HBM streams (patch matrix / kernel output);
    use jnp.bfloat16 on v6e/v7x to halve HBM traffic (accumulation stays f32 in-kernel).
    """
    N, C, H, W = x.shape
    Ho = (H + 2 * 1 - K) // STRIDE + 1
    Wo = (W + 2 * 1 - K) // STRIDE + 1
    Hp, Wp = STRIDE * Ho, STRIDE * Wo

    # ---- glue: pad so conv taps tile exactly (stride == kernel), then im2col-transpose ----
    xp = jnp.pad(x, ((0, 0), (0, 0),
                     (1, max(0, Hp - H - 1)),
                     (1, max(0, Wp - W - 1))))
    xp = xp[:, :, :Hp, :Wp]                                    # (N, C, 3Ho, 3Wo)
    xp6 = xp.reshape(N, C, Ho, K, Wo, K)                       # (n, c, i, ki, j, kj)
    a_T = jnp.transpose(xp6, (1, 3, 5, 0, 2, 4)).reshape(K1, N * Ho * Wo)
    a_T = a_T.astype(io_dtype)
    # TODO(synk): fold this tap shuffle + the output interleave below into the kernel (see header).

    # ---- glue: weight layouts (rows of a_T are (ci, kh, kw) with kw fastest) ----
    w1_mat = w1.reshape(CMID, K1)                              # (co, ci*kh*kw) -> (3, 27)
    b1_col = b1.reshape(CMID, 1)
    # ConvTranspose2d weight (ci, co, kh, kw) -> rows (co, kh, kw), cols ci -> (27, 3)
    w2_mat = jnp.transpose(w2, (1, 2, 3, 0)).reshape(K2, CMID)
    b2_col = jnp.repeat(b2, K * K).reshape(K2, 1)

    # ---- lane-dense row tiling over the flattened (n, i, j) axis ----
    total = N * Ho * Wo
    # Big tile (multiple of 128), capped at 16K cols and at ~half the work so the grid keeps
    # >= 2 steps whenever possible (both v7x TensorCores get work via "parallel" semantics).
    TM = max(128, min(16384, pl.cdiv(pl.cdiv(total, 2), 128) * 128))
    # Only round the column count up to the next multiple of 128 (cheap, lane-aligned); the
    # ragged last tile (if any) uses Pallas boundary-block handling. Each output column depends
    # only on its own input column, so garbage/zero tail columns never contaminate real ones.
    total_pad = pl.cdiv(total, 128) * 128
    a_T = jnp.pad(a_T, ((0, 0), (0, total_pad - total)))
    grid = (pl.cdiv(total_pad, TM),)

    z_full = pl.pallas_call(
        _fused_kernel,
        out_shape=jax.ShapeDtypeStruct((K2, total_pad), io_dtype),
        grid=grid,
        in_specs=[
            pl.BlockSpec((K1, TM), lambda i: (0, i)),
            pl.BlockSpec((CMID, K1), lambda i: (0, 0)),
            pl.BlockSpec((CMID, 1), lambda i: (0, 0)),
            pl.BlockSpec((K2, CMID), lambda i: (0, 0)),
            pl.BlockSpec((K2, 1), lambda i: (0, 0)),
        ],
        out_specs=pl.BlockSpec((K2, TM), lambda i: (0, i)),
        compiler_params=pltpu.CompilerParams(
            dimension_semantics=("parallel",),                 # shard row tiles across TCs (v7x)
            vmem_limit_bytes=32 * 1024 * 1024,
        ),
    )(a_T, w1_mat, b1_col, w2_mat, b2_col)

    # ---- glue: interleave transpose-conv taps back to dense spatial grid, crop ----
    z = z_full[:, :total].astype(jnp.float32).reshape(COUT, K, K, N, Ho, Wo)  # (co, kh, kw, n, i, j)
    z = jnp.transpose(z, (3, 0, 4, 1, 5, 2)).reshape(N, COUT, Hp, Wp)
    return z[:, :C, :H, :W]                                    # crop like y[0:N,0:C,0:H,0:W]


def reference_forward(x, w1, b1, w2, b2):
    """Pure-JAX reference using lax convolutions (PyTorch semantics), high precision."""
    dn = lax.conv_dimension_numbers(x.shape, w1.shape, ('NCHW', 'OIHW', 'NCHW'))
    y = lax.conv_general_dilated(x, w1, window_strides=(STRIDE, STRIDE),
                                 padding=((1, 1), (1, 1)), dimension_numbers=dn,
                                 precision=lax.Precision.HIGHEST)
    y = jnp.maximum(y + b1[None, :, None, None], 0.0)
    # ConvTranspose2d(stride=3, pad=0) == lhs-dilated conv with flipped, transposed kernel
    w2_conv = jnp.transpose(w2, (1, 0, 2, 3))[:, :, ::-1, ::-1]
    dn2 = lax.conv_dimension_numbers(y.shape, w2_conv.shape, ('NCHW', 'OIHW', 'NCHW'))
    z = lax.conv_general_dilated(y, w2_conv, window_strides=(1, 1),
                                 padding=((K - 1, K - 1), (K - 1, K - 1)),
                                 lhs_dilation=(STRIDE, STRIDE), dimension_numbers=dn2,
                                 precision=lax.Precision.HIGHEST)
    z = z + b2[None, :, None, None]
    return z[:, :x.shape[1], :x.shape[2], :x.shape[3]]


if __name__ == "__main__":
    key = jax.random.PRNGKey(0)
    k_x, k_w1, k_b1, k_w2, k_b2 = jax.random.split(key, 5)
    N, C, H, W = 2, 3, 16, 16                                   # module hardcodes 3 channels
    x = jax.random.normal(k_x, (N, C, H, W), dtype=jnp.float32)

    # deterministic synthetic parameter init (shapes match the PyTorch module's __init__)
    bound1 = 1.0 / np.sqrt(CIN * K * K)
    w1 = jax.random.uniform(k_w1, (CMID, CIN, K, K), jnp.float32, -bound1, bound1)
    b1 = jax.random.uniform(k_b1, (CMID,), jnp.float32, -bound1, bound1)
    bound2 = 1.0 / np.sqrt(COUT * K * K)
    w2 = jax.random.uniform(k_w2, (CMID, COUT, K, K), jnp.float32, -bound2, bound2)
    b2 = jax.random.uniform(k_b2, (COUT,), jnp.float32, -bound2, bound2)

    ref = reference_forward(x, w1, b1, w2, b2)

    # f32 datapath (default; tolerance accounts for MXU f32 matmul being bf16 multi-pass on TPU)
    fwd_f32 = jax.jit(functools.partial(embedding_mod_forward, io_dtype=jnp.float32))
    out = jax.block_until_ready(fwd_f32(x, w1, b1, w2, b2))
    assert out.shape == x.shape
    np.testing.assert_allclose(np.asarray(out), np.asarray(ref), rtol=1e-3, atol=1e-3)

    # bf16-I/O variant (halved HBM bytes on the two big streams; recommended on v6e/v7x),
    # checked against the f32 reference with bf16-appropriate tolerance.
    fwd_bf16 = jax.jit(functools.partial(embedding_mod_forward, io_dtype=jnp.bfloat16))
    out_bf16 = jax.block_until_ready(fwd_bf16(x, w1, b1, w2, b2))
    assert out_bf16.shape == x.shape
    np.testing.assert_allclose(np.asarray(out_bf16), np.asarray(ref), rtol=5e-2, atol=5e-2)

    print("KERNEL_OK")
</pallas_src>

<mosaic_0001>
module attributes {stable_mosaic.version = 11 : i64} {
  func.func @_fused_kernel(%arg0: i32, %arg1: memref<27x128xf32, #tpu.memory_space<vmem>>, %arg2: memref<3x27xf32, #tpu.memory_space<vmem>>, %arg3: memref<3x1xf32, #tpu.memory_space<vmem>>, %arg4: memref<27x3xf32, #tpu.memory_space<vmem>>, %arg5: memref<27x1xf32, #tpu.memory_space<vmem>>, %arg6: memref<27x128xf32, #tpu.memory_space<vmem>>) attributes {dimension_semantics = [#tpu.dimension_semantics<parallel>], iteration_bounds = array<i64: 1>, scalar_prefetch = 0 : i64, scratch_operands = 0 : i64, tpu.core_type = #tpu.core_type<tc>, window_params = [{transform_indices = @transform_0, window_bounds = array<i64: 27, 128>}, {pipeline_mode = #tpu.pipeline_mode<synchronous>, transform_indices = @transform_1, window_bounds = array<i64: 3, 27>}, {pipeline_mode = #tpu.pipeline_mode<synchronous>, transform_indices = @transform_2, window_bounds = array<i64: 3, 1>}, {pipeline_mode = #tpu.pipeline_mode<synchronous>, transform_indices = @transform_3, window_bounds = array<i64: 27, 3>}, {pipeline_mode = #tpu.pipeline_mode<synchronous>, transform_indices = @transform_4, window_bounds = array<i64: 27, 1>}, {transform_indices = @transform_5, window_bounds = array<i64: 27, 128>}]} {
    %c0 = arith.constant 0 : index
    %c0_0 = arith.constant 0 : index
    %0 = vector.load %arg1[%c0, %c0_0] : memref<27x128xf32, #tpu.memory_space<vmem>>, vector<27x128xf32>
    %c0_1 = arith.constant 0 : index
    %c0_2 = arith.constant 0 : index
    %1 = vector.load %arg2[%c0_1, %c0_2] : memref<3x27xf32, #tpu.memory_space<vmem>>, vector<3x27xf32>
    %cst = arith.constant dense<0.000000e+00> : vector<3x128xf32>
    %2 = tpu.matmul %1, %0, %cst {dimension_numbers = #tpu.dot_dimension_numbers<[1], [0], [0], [1], [0, 0, 1, 1], [], []>} : vector<3x27xf32>, vector<27x128xf32>, vector<3x128xf32> -> vector<3x128xf32>
    %c0_3 = arith.constant 0 : index
    %c0_4 = arith.constant 0 : index
    %3 = vector.load %arg3[%c0_3, %c0_4] : memref<3x1xf32, #tpu.memory_space<vmem>>, vector<3x1xf32>
    %4 = vector.broadcast %3 : vector<3x1xf32> to vector<3x128xf32>
    %5 = arith.addf %2, %4 : vector<3x128xf32>
    %cst_5 = arith.constant 0.000000e+00 : f32
    %6 = vector.broadcast %cst_5 : f32 to vector<3x128xf32>
    %7 = arith.maximumf %5, %6 : vector<3x128xf32>
    %c0_6 = arith.constant 0 : index
    %c0_7 = arith.constant 0 : index
    %8 = vector.load %arg4[%c0_6, %c0_7] : memref<27x3xf32, #tpu.memory_space<vmem>>, vector<27x3xf32>
    %cst_8 = arith.constant dense<0.000000e+00> : vector<27x128xf32>
    %9 = tpu.matmul %8, %7, %cst_8 {dimension_numbers = #tpu.dot_dimension_numbers<[1], [0], [0], [1], [0, 0, 1, 1], [], []>} : vector<27x3xf32>, vector<3x128xf32>, vector<27x128xf32> -> vector<27x128xf32>
    %c0_9 = arith.constant 0 : index
    %c0_10 = arith.constant 0 : index
    %10 = vector.load %arg5[%c0_9, %c0_10] : memref<27x1xf32, #tpu.memory_space<vmem>>, vector<27x1xf32>
    %11 = vector.broadcast %10 : vector<27x1xf32> to vector<27x128xf32>
    %12 = arith.addf %9, %11 : vector<27x128xf32>
    %c0_11 = arith.constant 0 : index
    %c0_12 = arith.constant 0 : index
    %13 = vector.load %arg6[%c0_11, %c0_12] : memref<27x128xf32, #tpu.memory_space<vmem>>, vector<27x128xf32>
    tpu.vector_store %arg6[%c0_11, %c0_12], %12 {strides = array<i32>} : memref<27x128xf32, #tpu.memory_space<vmem>>, vector<27x128xf32>,
    return
  }
  func.func @transform_0(%arg0: i32) -> (i32, i32) {
    %c0_i32 = arith.constant 0 : i32
    %c0_i32_0 = arith.constant 0 : i32
    return %c0_i32, %arg0 : i32, i32
  }
  func.func @transform_1(%arg0: i32) -> (i32, i32) {
    %c0_i32 = arith.constant 0 : i32
    %c0_i32_0 = arith.constant 0 : i32
    %c0_i32_1 = arith.constant 0 : i32
    return %c0_i32, %c0_i32_0 : i32, i32
  }
  func.func @transform_2(%arg0: i32) -> (i32, i32) {
    %c0_i32 = arith.constant 0 : i32
    %c0_i32_0 = arith.constant 0 : i32
    %c0_i32_1 = arith.constant 0 : i32
    return %c0_i32, %c0_i32_0 : i32, i32
  }
  func.func @transform_3(%arg0: i32) -> (i32, i32) {
    %c0_i32 = arith.constant 0 : i32
    %c0_i32_0 = arith.constant 0 : i32
    %c0_i32_1 = arith.constant 0 : i32
    return %c0_i32, %c0_i32_0 : i32, i32
  }
  func.func @transform_4(%arg0: i32) -> (i32, i32) {
    %c0_i32 = arith.constant 0 : i32
    %c0_i32_0 = arith.constant 0 : i32
    %c0_i32_1 = arith.constant 0 : i32
    return %c0_i32, %c0_i32_0 : i32, i32
  }
  func.func @transform_5(%arg0: i32) -> (i32, i32) {
    %c0_i32 = arith.constant 0 : i32
    %c0_i32_0 = arith.constant 0 : i32
    return %c0_i32, %arg0 : i32, i32
  }
}

</mosaic_0001>

<llo_original>
// kernel: embedding_mod_forward.1
$region0: #{embedding_mod_forward.1}
  #allocation0 [shape = 'u32[]', space=smem, size = 0x4, offset = 0x4, fixed_abs, tag = 'smem constant byte address 0x4 - core index']
  #allocation1 [shape = 'u32[72,128]{1,0:T(1,128)}', space=vmem, size = 0x9000, scoped, tag = 'internal scratch']
  %s0 = inlined_call_operand.vmem [shape: f32[27,128], index: 0, kind: input, shape index: {}]
  %s1 = inlined_call_operand.vmem [shape: f32[3,27], index: 1, kind: input, shape index: {}]
  %s2 = inlined_call_operand.vmem [shape: f32[3,1], index: 2, kind: input, shape index: {}]
  %s3 = inlined_call_operand.vmem [shape: f32[27,3], index: 3, kind: input, shape index: {}]
  %s4 = inlined_call_operand.vmem [shape: f32[27,1], index: 4, kind: input, shape index: {}]
  %s5 = inlined_call_operand.vmem [shape: f32[27,128], index: 5, kind: output, shape index: {}]
  %s6 = sld [smem:[#allocation0]]
  $region30: #{embedding_mod_forward.1} parent=0
    _
  %s8 = ssub.s32 1, %s6
  %s9 = scalar_select 0, %s8, %s6
  // Predicated region
  $region2: #{embedding_mod_forward.1} parent=0 // pred_check
    _
  $region3: #{embedding_mod_forward.1} parent=0 // pred_check_branch
    %11 = sbr.rel (0) target = $region5
  $region4: #{embedding_mod_forward.1} parent=0 // pred_region
    _
  $region5: #{embedding_mod_forward.1} parent=0 // pred_fallthru
    _
  // Predicated region
  $region6: #{embedding_mod_forward.1} parent=0 // pred_check
    _
  $region7: #{embedding_mod_forward.1} parent=0 // pred_check_branch
    %13 = sbr.rel (0) target = $region9
  $region8: #{embedding_mod_forward.1} parent=0 // pred_region
    _
  $region9: #{embedding_mod_forward.1} parent=0 // pred_fallthru
    _
  // Predicated region
  $region10: #{embedding_mod_forward.1} parent=0 // pred_check
    _
  $region11: #{embedding_mod_forward.1} parent=0 // pred_check_branch
    %15 = sbr.rel (0) target = $region13
  $region12: #{embedding_mod_forward.1} parent=0 // pred_region
    _
  $region13: #{embedding_mod_forward.1} parent=0 // pred_fallthru
    _
  // Predicated region
  $region14: #{embedding_mod_forward.1} parent=0 // pred_check
    _
  $region15: #{embedding_mod_forward.1} parent=0 // pred_check_branch
    %17 = sbr.rel (0) target = $region17
  $region16: #{embedding_mod_forward.1} parent=0 // pred_region
    _
  $region17: #{embedding_mod_forward.1} parent=0 // pred_fallthru
    _
  // Predicated region
  $region18: #{embedding_mod_forward.1} parent=0 // pred_check
    _
  $region19: #{embedding_mod_forward.1} parent=0 // pred_check_branch
    %19 = sbr.rel (0) target = $region21
  $region20: #{embedding_mod_forward.1} parent=0 // pred_region
    _
  $region21: #{embedding_mod_forward.1} parent=0 // pred_fallthru
    _
  %v20 = vld [vmem:[%s0] sm:$0xff]
  %v21 = vld [vmem:[%s0 + $0x8] sm:$0xff]
  %v22 = vld [vmem:[%s0 + $0x10] sm:$0xff]
  %v23 = vld [vmem:[%s0 + $0x18] sm:$0x7]
  %v24 = vld [vmem:[%s1] sm:$0x7]
  %v25 = vld [vmem:[%s2] sm:$0x7]
  %27 = vset.pattern.permute.xlu0 0
  %28 = vperm.xlu0 %27, %v25
  %v29 = vpop.permute.xlu0 %28
  %vm31 = vcmask 220160
  %v33 = vsel %vm31, %v24, 0
  %vm35 = vcmask 1042432
  %v37 = vsel %vm35, %v23, 0
  %39 = vmatpush.msra.mxu0 0.0
  %40 = vmatpush.msra.mxu0 0.0
  %41 = vmatpush.msra.mxu0 0.0
  %42 = vmatpush.msra.mxu0 0.0
  %43 = vmatpush.msra.mxu0 0.0
  %44 = vmatpush.msra.mxu0 0.0
  %45 = vmatpush.msra.mxu0 0.0
  %46 = vmatpush.msra.mxu0 0.0
  %47 = vmatpush.msra.mxu0 0.0
  %48 = vmatpush.msra.mxu0 0.0
  %49 = vmatpush.msra.mxu0 0.0
  %50 = vmatpush.msra.mxu0 0.0
  %51 = vmatpush.msra.mxu0 %v37
  %52 = vmatpush.msra.mxu0 %v22
  %53 = vmatpush.msra.mxu0 %v21
  %54 = vmatpush.msra.mxu0 %v20
  %55 = vmatmul.f32.gmra.mxu0 %v33
  %v56 = vpop.f32.mrf.mxu0
  %v57 = vadd.f32 %v29, %v56
  %58 = vdwg.mxu0
  %v59 = vmax.f32 %v57, 0.0
  %v60 = vld [vmem:[%s3] sm:$0xff]
  %v61 = vld [vmem:[%s3 + $0x8] sm:$0xff]
  %v62 = vld [vmem:[%s3 + $0x10] sm:$0xff]
  %v63 = vld [vmem:[%s3 + $0x18] sm:$0x7]
  %v64 = vld [vmem:[%s4] sm:$0xff]
  %v65 = vld [vmem:[%s4 + $0x8] sm:$0xff]
  %v66 = vld [vmem:[%s4 + $0x10] sm:$0xff]
  %v67 = vld [vmem:[%s4 + $0x18] sm:$0x7]
  %69 = vset.pattern.permute.xlu0 0
  %70 = vperm.xlu0 %69, %v64
  %v71 = vpop.permute.xlu0 %70
  %74 = vset.pattern.permute.xlu0 0
  %75 = vperm.xlu0 %74, %v65
  %v76 = vpop.permute.xlu0 %75
  %79 = vset.pattern.permute.xlu0 0
  %80 = vperm.xlu0 %79, %v66
  %v81 = vpop.permute.xlu0 %80
  %84 = vset.pattern.permute.xlu0 0
  %85 = vperm.xlu0 %84, %v67
  %v86 = vpop.permute.xlu0 %85
  %vm88 = vcmask 23552
  %v90 = vsel %vm88, %v60, 0
  %v93 = vsel %vm88, %v61, 0
  %v96 = vsel %vm88, %v62, 0
  %v99 = vsel %vm88, %v63, 0
  %v102 = vsel %vm35, %v59, 0
  %104 = vmatpush.msra.mxu0 0.0
  %105 = vmatpush.msra.mxu0 0.0
  %106 = vmatpush.msra.mxu0 0.0
  %107 = vmatpush.msra.mxu0 0.0
  %108 = vmatpush.msra.mxu0 0.0
  %109 = vmatpush.msra.mxu0 0.0
  %110 = vmatpush.msra.mxu0 0.0
  %111 = vmatpush.msra.mxu0 0.0
  %112 = vmatpush.msra.mxu0 0.0
  %113 = vmatpush.msra.mxu0 0.0
  %114 = vmatpush.msra.mxu0 0.0
  %115 = vmatpush.msra.mxu0 0.0
  %116 = vmatpush.msra.mxu0 0.0
  %117 = vmatpush.msra.mxu0 0.0
  %118 = vmatpush.msra.mxu0 0.0
  %119 = vmatpush.msra.mxu0 %v102
  %120 = vmatmul.f32.gmra.mxu0 %v90
  %v121 = vpop.f32.mrf.mxu0
  %v122 = vadd.f32 %v71, %v121
  %123 = vmatmul.f32.gmra.mxu0 %v93
  %v124 = vpop.f32.mrf.mxu0
  %v125 = vadd.f32 %v76, %v124
  %126 = vmatmul.f32.gmra.mxu0 %v96
  %v127 = vpop.f32.mrf.mxu0
  %v128 = vadd.f32 %v81, %v127
  %129 = vmatmul.f32.gmra.mxu0 %v99
  %v130 = vpop.f32.mrf.mxu0
  %v131 = vadd.f32 %v86, %v130
  %132 = vdwg.mxu0
  %133 = vst [vmem:[%s5] sm:$0xff] %v122
  %134 = vst [vmem:[%s5 + $0x8] sm:$0xff] %v125
  %135 = vst [vmem:[%s5 + $0x10] sm:$0xff] %v128
  %136 = vst [vmem:[%s5 + $0x18] sm:$0x7] %v131
  // Predicated region
  $region22: #{embedding_mod_forward.1} parent=0 // pred_check
    _
  $region23: #{embedding_mod_forward.1} parent=0 // pred_check_branch
    %138 = sbr.rel (0) target = $region25
  $region24: #{embedding_mod_forward.1} parent=0 // pred_region
    _
  $region25: #{embedding_mod_forward.1} parent=0 // pred_fallthru
    _
  // Predicated region
  $region26: #{embedding_mod_forward.1} parent=0 // pred_check
    _
  $region27: #{embedding_mod_forward.1} parent=0 // pred_check_branch
    %140 = sbr.rel (0) target = $region29
  $region28: #{embedding_mod_forward.1} parent=0 // pred_region
    _
  $region29: #{embedding_mod_forward.1} parent=0 // pred_fallthru
    _

</llo_original>
